<compile_context>
chip_gen: v5e
topology: v5e:2x2
jax: 0.10.0
libtpu: 0.0.40
codegen_flags: <defaults>
</compile_context>

<pallas_src>
import jax
import jax.numpy as jnp
from jax.experimental import pallas as pl
from jax.experimental.pallas import tpu as pltpu


def _round_up(v: int, m: int) -> int:
    return (v + m - 1) // m * m


def _gnn_kernel(x_ref, a_ref, p_ref,
                w_in_ref, b_in_ref,
                w_conv_ref, b_conv_ref,
                w_out_ref, b_out_ref,
                out_ref,
                h_ref, pooled_ref):
    """One grid step processes one TILE_N-row slab of the adjacency.

    Streamed per step : a_ref (TILE_N, N) bf16, p_ref (B, TILE_N) bf16.
    Resident          : x, weights/biases, h scratch (N, dim) bf16,
                        pooled scratch (B, dim) f32.
    """
    step = pl.program_id(0)

    # ---- step 0: input projection for ALL nodes + accumulator init ---------
    @pl.when(step == 0)
    def _init():
        h = jnp.dot(x_ref[...], w_in_ref[...],
                    preferred_element_type=jnp.float32)
        h = jnp.maximum(h + b_in_ref[...], 0.0)        # bias/ReLU on f32 acc
        h_ref[...] = h.astype(h_ref.dtype)             # bf16 for MXU reuse
        pooled_ref[...] = jnp.zeros_like(pooled_ref)

    # ---- every step: aggregate this row tile, transform, pool --------------
    # agg = A[tile, :] @ h                              (TILE_N, dim) f32
    agg = jnp.dot(a_ref[...], h_ref[...], preferred_element_type=jnp.float32)
    # h2 = relu(agg @ W_conv + b_conv)
    h2 = jnp.dot(agg.astype(jnp.bfloat16), w_conv_ref[...],
                 preferred_element_type=jnp.float32)
    h2 = jnp.maximum(h2 + b_conv_ref[...], 0.0)
    # pooled += P[:, tile] @ h2                         (B, dim) f32
    pooled_ref[...] += jnp.dot(p_ref[...], h2.astype(jnp.bfloat16),
                               preferred_element_type=jnp.float32)

    # ---- last step: classifier head -----------------------------------------
    @pl.when(step == pl.num_programs(0) - 1)
    def _finalize():
        out = jnp.dot(pooled_ref[...], w_out_ref[...],
                      preferred_element_type=jnp.float32)
        out_ref[...] = out + b_out_ref[...]


def carate_model_forward(x, edge_index, batch, edge_weight, params, num_graphs,
                         *, tile_n=256):
    """x: [N, F] f32, edge_index: [2, E] i32, batch: [N] i32,
    edge_weight: [E] f32 or None.  Returns [num_graphs, num_classes] f32."""
    w_in, b_in, w_conv, b_conv, w_out, b_out = params
    N, F = x.shape
    dim = w_in.shape[1]
    num_classes = w_out.shape[1]
    B = num_graphs

    if edge_weight is None:
        edge_weight = jnp.ones((edge_index.shape[1],), dtype=jnp.float32)

    # -- glue (plain JAX): dense adjacency + mean-pool matrix -----------------
    # TODO(synk): for large/sparse graphs replace the dense O(N^2) adjacency
    # with a CSR / scalar-prefetch gather formulation; dense is only suitable
    # for molecular-scale graphs (N up to a few thousand).
    src, dst = edge_index[0], edge_index[1]
    adj = jnp.zeros((N, N), dtype=jnp.float32).at[dst, src].add(edge_weight)

    one_hot = (batch[None, :] == jnp.arange(B)[:, None]).astype(jnp.float32)
    counts = jnp.maximum(one_hot.sum(axis=1, keepdims=True), 1.0)
    pool = one_hot / counts                                           # [B, N]

    # -- pad to MXU/lane-friendly shapes ---------------------------------------
    N_pad = _round_up(N, tile_n)
    F_pad = _round_up(F, 128)
    D_pad = _round_up(dim, 128)
    C_pad = _round_up(num_classes, 128)
    B_pad = _round_up(B, 8)

    def pad2(a, r, c):
        return jnp.pad(a, ((0, r - a.shape[0]), (0, c - a.shape[1])))

    x_p = pad2(x, N_pad, F_pad).astype(jnp.bfloat16)
    adj_p = pad2(adj, N_pad, N_pad).astype(jnp.bfloat16)     # cast once, bf16
    pool_p = pad2(pool, B_pad, N_pad).astype(jnp.bfloat16)

    w_in_p = pad2(w_in, F_pad, D_pad).astype(jnp.bfloat16)
    w_conv_p = pad2(w_conv, D_pad, D_pad).astype(jnp.bfloat16)
    w_out_p = pad2(w_out, D_pad, C_pad).astype(jnp.float32)   # tiny head: f32
    b_in_p = pad2(b_in.reshape(1, -1), 1, D_pad).astype(jnp.float32)
    b_conv_p = pad2(b_conv.reshape(1, -1), 1, D_pad).astype(jnp.float32)
    b_out_p = pad2(b_out.reshape(1, -1), 1, C_pad).astype(jnp.float32)

    num_tiles = N_pad // tile_n

    # -- BlockSpecs ------------------------------------------------------------
    def resident(shape):
        return pl.BlockSpec(shape, lambda i, _s=shape: (0,) * len(_s))

    in_specs = [
        resident((N_pad, F_pad)),                              # x   (resident)
        pl.BlockSpec((tile_n, N_pad), lambda i: (i, 0)),       # adj (streamed)
        pl.BlockSpec((B_pad, tile_n), lambda i: (0, i)),       # pool(streamed)
        resident((F_pad, D_pad)), resident((1, D_pad)),        # W_in, b_in
        resident((D_pad, D_pad)), resident((1, D_pad)),        # W_conv, b_conv
        resident((D_pad, C_pad)), resident((1, C_pad)),        # W_out, b_out
    ]
    out_spec = pl.BlockSpec((B_pad, C_pad), lambda i: (0, 0))

    # -- VMEM budget (double-buffered inputs + scratch) and cost estimate -----
    per_buf_bytes = (tile_n * N_pad * 2 + B_pad * tile_n * 2
                     + N_pad * F_pad * 2
                     + (F_pad * D_pad + D_pad * D_pad) * 2
                     + (D_pad * C_pad + 2 * D_pad + C_pad) * 4
                     + B_pad * C_pad * 4)
    scratch_bytes = N_pad * D_pad * 2 + B_pad * D_pad * 4
    vmem_limit = min(int(2 * per_buf_bytes + scratch_bytes) + (4 << 20),
                     128 << 20)

    flops = int(2 * (N_pad * F_pad * D_pad + N_pad * N_pad * D_pad
                     + N_pad * D_pad * D_pad + B_pad * N_pad * D_pad
                     + B_pad * D_pad * C_pad))
    bytes_accessed = int(N_pad * N_pad * 2 + N_pad * F_pad * 2
                         + B_pad * N_pad * 2
                         + (F_pad * D_pad + D_pad * D_pad) * 2
                         + D_pad * C_pad * 4 + B_pad * C_pad * 4)

    out_padded = pl.pallas_call(
        _gnn_kernel,
        out_shape=jax.ShapeDtypeStruct((B_pad, C_pad), jnp.float32),
        grid_spec=pltpu.PrefetchScalarGridSpec(
            num_scalar_prefetch=0,
            grid=(num_tiles,),
            in_specs=in_specs,
            out_specs=out_spec,
            scratch_shapes=[pltpu.VMEM((N_pad, D_pad), jnp.bfloat16),  # h
                            pltpu.VMEM((B_pad, D_pad), jnp.float32)],  # pooled
        ),
        compiler_params=pltpu.CompilerParams(
            # row-tile axis carries the pooled accumulation -> reduction axis
            dimension_semantics=("arbitrary",),
            vmem_limit_bytes=vmem_limit,
        ),
        cost_estimate=pl.CostEstimate(flops=flops, transcendentals=0,
                                      bytes_accessed=bytes_accessed),
    )(x_p, adj_p, pool_p, w_in_p, b_in_p, w_conv_p, b_conv_p, w_out_p, b_out_p)

    return out_padded[:B, :num_classes]


def init_params(key, num_features, dim, num_classes):
    k1, k2, k3 = jax.random.split(key, 3)
    scale_in = 1.0 / jnp.sqrt(num_features)
    scale_h = 1.0 / jnp.sqrt(dim)
    w_in = jax.random.normal(k1, (num_features, dim), jnp.float32) * scale_in
    b_in = jnp.zeros((dim,), jnp.float32)
    w_conv = jax.random.normal(k2, (dim, dim), jnp.float32) * scale_h
    b_conv = jnp.zeros((dim,), jnp.float32)
    w_out = jax.random.normal(k3, (dim, num_classes), jnp.float32) * scale_h
    b_out = jnp.zeros((num_classes,), jnp.float32)
    return (w_in, b_in, w_conv, b_conv, w_out, b_out)


def _reference_forward(x, adj, pool, params):
    w_in, b_in, w_conv, b_conv, w_out, b_out = params
    h = jnp.maximum(x @ w_in + b_in[None, :], 0.0)
    agg = adj @ h
    h2 = jnp.maximum(agg @ w_conv + b_conv[None, :], 0.0)
    pooled = pool @ h2
    return pooled @ w_out + b_out[None, :]


if __name__ == "__main__":
    # Small deterministic problem: dim=64, num_classes=4, num_features=32,
    # N=16 nodes split into B=2 graphs, E=40 edges.
    num_features, dim, num_classes = 32, 64, 4
    N, E, B = 16, 40, 2

    key = jax.random.PRNGKey(0)
    k_x, k_src, k_dst, k_w, k_params = jax.random.split(key, 5)

    x = jax.random.normal(k_x, (N, num_features), jnp.float32)
    src = jax.random.randint(k_src, (E,), 0, N, jnp.int32)
    dst = jax.random.randint(k_dst, (E,), 0, N, jnp.int32)
    edge_index = jnp.stack([src, dst], axis=0)               # [2, E]
    edge_weight = jax.random.uniform(k_w, (E,), jnp.float32)
    batch = jnp.concatenate([jnp.zeros((N // 2,), jnp.int32),
                             jnp.ones((N - N // 2,), jnp.int32)])

    params = init_params(k_params, num_features, dim, num_classes)

    out = carate_model_forward(x, edge_index, batch, edge_weight, params, B)
    out = jax.block_until_ready(out)
    assert out.shape == (B, num_classes)

    # Loose-tolerance sanity check vs a pure-JAX f32 reference (kernel uses
    # bf16 matmul inputs with f32 accumulation).
    adj_ref = jnp.zeros((N, N), jnp.float32).at[edge_index[1], edge_index[0]].add(edge_weight)
    one_hot = (batch[None, :] == jnp.arange(B)[:, None]).astype(jnp.float32)
    pool_ref = one_hot / jnp.maximum(one_hot.sum(axis=1, keepdims=True), 1.0)
    ref = _reference_forward(x, adj_ref, pool_ref, params)
    max_err = float(jnp.max(jnp.abs(out - ref)))
    assert max_err < 0.2, f"max abs error {max_err} too large"

    print("KERNEL_OK")
</pallas_src>

<mosaic_0001>
module attributes {stable_mosaic.version = 11 : i64} {
  func.func @_gnn_kernel(%arg0: i32, %arg1: memref<256x128xbf16, #tpu.memory_space<vmem>>, %arg2: memref<256x256xbf16, #tpu.memory_space<vmem>>, %arg3: memref<8x256xbf16, #tpu.memory_space<vmem>>, %arg4: memref<128x128xbf16, #tpu.memory_space<vmem>>, %arg5: memref<1x128xf32, #tpu.memory_space<vmem>>, %arg6: memref<128x128xbf16, #tpu.memory_space<vmem>>, %arg7: memref<1x128xf32, #tpu.memory_space<vmem>>, %arg8: memref<128x128xf32, #tpu.memory_space<vmem>>, %arg9: memref<1x128xf32, #tpu.memory_space<vmem>>, %arg10: memref<8x128xf32, #tpu.memory_space<vmem>>, %arg11: memref<256x128xbf16, #tpu.memory_space<vmem>>, %arg12: memref<8x128xf32, #tpu.memory_space<vmem>>) attributes {dimension_semantics = [#tpu.dimension_semantics<arbitrary>], iteration_bounds = array<i64: 1>, scalar_prefetch = 0 : i64, scratch_operands = 2 : i64, tpu.core_type = #tpu.core_type<tc>, window_params = [{pipeline_mode = #tpu.pipeline_mode<synchronous>, transform_indices = @transform_0, window_bounds = array<i64: 256, 128>}, {transform_indices = @transform_1, window_bounds = array<i64: 256, 256>}, {transform_indices = @transform_2, window_bounds = array<i64: 8, 256>}, {pipeline_mode = #tpu.pipeline_mode<synchronous>, transform_indices = @transform_3, window_bounds = array<i64: 128, 128>}, {pipeline_mode = #tpu.pipeline_mode<synchronous>, transform_indices = @transform_4, window_bounds = array<i64: 1, 128>}, {pipeline_mode = #tpu.pipeline_mode<synchronous>, transform_indices = @transform_5, window_bounds = array<i64: 128, 128>}, {pipeline_mode = #tpu.pipeline_mode<synchronous>, transform_indices = @transform_6, window_bounds = array<i64: 1, 128>}, {pipeline_mode = #tpu.pipeline_mode<synchronous>, transform_indices = @transform_7, window_bounds = array<i64: 128, 128>}, {pipeline_mode = #tpu.pipeline_mode<synchronous>, transform_indices = @transform_8, window_bounds = array<i64: 1, 128>}, {pipeline_mode = #tpu.pipeline_mode<synchronous>, transform_indices = @transform_9, window_bounds = array<i64: 8, 128>}]} {
    %c0_i32 = arith.constant 0 : i32
    %0 = arith.cmpi eq, %arg0, %c0_i32 : i32
    %1 = arith.extui %0 : i1 to i32
    %c0_i32_0 = arith.constant 0 : i32
    %2 = arith.cmpi ne, %1, %c0_i32_0 : i32
    scf.if %2 {
      %c0_19 = arith.constant 0 : index
      %c0_20 = arith.constant 0 : index
      %23 = vector.load %arg1[%c0_19, %c0_20] : memref<256x128xbf16, #tpu.memory_space<vmem>>, vector<256x128xbf16>
      %c0_21 = arith.constant 0 : index
      %c0_22 = arith.constant 0 : index
      %24 = vector.load %arg4[%c0_21, %c0_22] : memref<128x128xbf16, #tpu.memory_space<vmem>>, vector<128x128xbf16>
      %cst_23 = arith.constant dense<0.000000e+00> : vector<256x128xf32>
      %25 = tpu.matmul %23, %24, %cst_23 {dimension_numbers = #tpu.dot_dimension_numbers<[1], [0], [0], [1], [0, 0, 1, 1], [], []>} : vector<256x128xbf16>, vector<128x128xbf16>, vector<256x128xf32> -> vector<256x128xf32>
      %c0_24 = arith.constant 0 : index
      %c0_25 = arith.constant 0 : index
      %26 = vector.load %arg5[%c0_24, %c0_25] : memref<1x128xf32, #tpu.memory_space<vmem>>, vector<1x128xf32>
      %27 = vector.broadcast %26 : vector<1x128xf32> to vector<256x128xf32>
      %28 = arith.addf %25, %27 : vector<256x128xf32>
      %cst_26 = arith.constant 0.000000e+00 : f32
      %29 = vector.broadcast %cst_26 : f32 to vector<256x128xf32>
      %30 = arith.maximumf %28, %29 : vector<256x128xf32>
      %31 = arith.truncf %30 : vector<256x128xf32> to vector<256x128xbf16>
      %c0_27 = arith.constant 0 : index
      %c0_28 = arith.constant 0 : index
      %32 = vector.load %arg11[%c0_27, %c0_28] : memref<256x128xbf16, #tpu.memory_space<vmem>>, vector<256x128xbf16>
      tpu.vector_store %arg11[%c0_27, %c0_28], %31 {strides = array<i32>} : memref<256x128xbf16, #tpu.memory_space<vmem>>, vector<256x128xbf16>,
      %cst_29 = arith.constant 0.000000e+00 : f32
      %33 = vector.broadcast %cst_29 : f32 to vector<8x128xf32>
      %c0_30 = arith.constant 0 : index
      %c0_31 = arith.constant 0 : index
      %34 = vector.load %arg12[%c0_30, %c0_31] : memref<8x128xf32, #tpu.memory_space<vmem>>, vector<8x128xf32>
      tpu.vector_store %arg12[%c0_30, %c0_31], %33 {strides = array<i32>} : memref<8x128xf32, #tpu.memory_space<vmem>>, vector<8x128xf32>,
    } else {
    }
    %c0 = arith.constant 0 : index
    %c0_1 = arith.constant 0 : index
    %3 = vector.load %arg2[%c0, %c0_1] : memref<256x256xbf16, #tpu.memory_space<vmem>>, vector<256x256xbf16>
    %c0_2 = arith.constant 0 : index
    %c0_3 = arith.constant 0 : index
    %4 = vector.load %arg11[%c0_2, %c0_3] : memref<256x128xbf16, #tpu.memory_space<vmem>>, vector<256x128xbf16>
    %cst = arith.constant dense<0.000000e+00> : vector<256x128xf32>
    %5 = tpu.matmul %3, %4, %cst {dimension_numbers = #tpu.dot_dimension_numbers<[1], [0], [0], [1], [0, 0, 1, 1], [], []>} : vector<256x256xbf16>, vector<256x128xbf16>, vector<256x128xf32> -> vector<256x128xf32>
    %6 = arith.truncf %5 : vector<256x128xf32> to vector<256x128xbf16>
    %c0_4 = arith.constant 0 : index
    %c0_5 = arith.constant 0 : index
    %7 = vector.load %arg6[%c0_4, %c0_5] : memref<128x128xbf16, #tpu.memory_space<vmem>>, vector<128x128xbf16>
    %cst_6 = arith.constant dense<0.000000e+00> : vector<256x128xf32>
    %8 = tpu.matmul %6, %7, %cst_6 {dimension_numbers = #tpu.dot_dimension_numbers<[1], [0], [0], [1], [0, 0, 1, 1], [], []>} : vector<256x128xbf16>, vector<128x128xbf16>, vector<256x128xf32> -> vector<256x128xf32>
    %c0_7 = arith.constant 0 : index
    %c0_8 = arith.constant 0 : index
    %9 = vector.load %arg7[%c0_7, %c0_8] : memref<1x128xf32, #tpu.memory_space<vmem>>, vector<1x128xf32>
    %10 = vector.broadcast %9 : vector<1x128xf32> to vector<256x128xf32>
    %11 = arith.addf %8, %10 : vector<256x128xf32>
    %cst_9 = arith.constant 0.000000e+00 : f32
    %12 = vector.broadcast %cst_9 : f32 to vector<256x128xf32>
    %13 = arith.maximumf %11, %12 : vector<256x128xf32>
    %c0_10 = arith.constant 0 : index
    %c0_11 = arith.constant 0 : index
    %14 = vector.load %arg12[%c0_10, %c0_11] : memref<8x128xf32, #tpu.memory_space<vmem>>, vector<8x128xf32>
    %c0_12 = arith.constant 0 : index
    %c0_13 = arith.constant 0 : index
    %15 = vector.load %arg3[%c0_12, %c0_13] : memref<8x256xbf16, #tpu.memory_space<vmem>>, vector<8x256xbf16>
    %16 = arith.truncf %13 : vector<256x128xf32> to vector<256x128xbf16>
    %cst_14 = arith.constant dense<0.000000e+00> : vector<8x128xf32>
    %17 = tpu.matmul %15, %16, %cst_14 {dimension_numbers = #tpu.dot_dimension_numbers<[1], [0], [0], [1], [0, 0, 1, 1], [], []>} : vector<8x256xbf16>, vector<256x128xbf16>, vector<8x128xf32> -> vector<8x128xf32>
    %18 = arith.addf %14, %17 : vector<8x128xf32>
    %c0_15 = arith.constant 0 : index
    %c0_16 = arith.constant 0 : index
    %19 = vector.load %arg12[%c0_15, %c0_16] : memref<8x128xf32, #tpu.memory_space<vmem>>, vector<8x128xf32>
    tpu.vector_store %arg12[%c0_15, %c0_16], %18 {strides = array<i32>} : memref<8x128xf32, #tpu.memory_space<vmem>>, vector<8x128xf32>,
    %c0_i32_17 = arith.constant 0 : i32
    %20 = arith.cmpi eq, %arg0, %c0_i32_17 : i32
    %21 = arith.extui %20 : i1 to i32
    %c0_i32_18 = arith.constant 0 : i32
    %22 = arith.cmpi ne, %21, %c0_i32_18 : i32
    scf.if %22 {
      %c0_19 = arith.constant 0 : index
      %c0_20 = arith.constant 0 : index
      %23 = vector.load %arg12[%c0_19, %c0_20] : memref<8x128xf32, #tpu.memory_space<vmem>>, vector<8x128xf32>
      %c0_21 = arith.constant 0 : index
      %c0_22 = arith.constant 0 : index
      %24 = vector.load %arg8[%c0_21, %c0_22] : memref<128x128xf32, #tpu.memory_space<vmem>>, vector<128x128xf32>
      %cst_23 = arith.constant dense<0.000000e+00> : vector<8x128xf32>
      %25 = tpu.matmul %23, %24, %cst_23 {dimension_numbers = #tpu.dot_dimension_numbers<[1], [0], [0], [1], [0, 0, 1, 1], [], []>} : vector<8x128xf32>, vector<128x128xf32>, vector<8x128xf32> -> vector<8x128xf32>
      %c0_24 = arith.constant 0 : index
      %c0_25 = arith.constant 0 : index
      %26 = vector.load %arg9[%c0_24, %c0_25] : memref<1x128xf32, #tpu.memory_space<vmem>>, vector<1x128xf32>
      %27 = vector.broadcast %26 : vector<1x128xf32> to vector<8x128xf32>
      %28 = arith.addf %25, %27 : vector<8x128xf32>
      %c0_26 = arith.constant 0 : index
      %c0_27 = arith.constant 0 : index
      %29 = vector.load %arg10[%c0_26, %c0_27] : memref<8x128xf32, #tpu.memory_space<vmem>>, vector<8x128xf32>
      tpu.vector_store %arg10[%c0_26, %c0_27], %28 {strides = array<i32>} : memref<8x128xf32, #tpu.memory_space<vmem>>, vector<8x128xf32>,
    } else {
    }
    return
  }
  func.func @transform_0(%arg0: i32) -> (i32, i32) {
    %c0_i32 = arith.constant 0 : i32
    %c0_i32_0 = arith.constant 0 : i32
    %c0_i32_1 = arith.constant 0 : i32
    return %c0_i32, %c0_i32_0 : i32, i32
  }
  func.func @transform_1(%arg0: i32) -> (i32, i32) {
    %c0_i32 = arith.constant 0 : i32
    %c0_i32_0 = arith.constant 0 : i32
    return %arg0, %c0_i32 : i32, i32
  }
  func.func @transform_2(%arg0: i32) -> (i32, i32) {
    %c0_i32 = arith.constant 0 : i32
    %c0_i32_0 = arith.constant 0 : i32
    return %c0_i32, %arg0 : i32, i32
  }
  func.func @transform_3(%arg0: i32) -> (i32, i32) {
    %c0_i32 = arith.constant 0 : i32
    %c0_i32_0 = arith.constant 0 : i32
    %c0_i32_1 = arith.constant 0 : i32
    return %c0_i32, %c0_i32_0 : i32, i32
  }
  func.func @transform_4(%arg0: i32) -> (i32, i32) {
    %c0_i32 = arith.constant 0 : i32
    %c0_i32_0 = arith.constant 0 : i32
    %c0_i32_1 = arith.constant 0 : i32
    return %c0_i32, %c0_i32_0 : i32, i32
  }
  func.func @transform_5(%arg0: i32) -> (i32, i32) {
    %c0_i32 = arith.constant 0 : i32
    %c0_i32_0 = arith.constant 0 : i32
    %c0_i32_1 = arith.constant 0 : i32
    return %c0_i32, %c0_i32_0 : i32, i32
  }
  func.func @transform_6(%arg0: i32) -> (i32, i32) {
    %c0_i32 = arith.constant 0 : i32
    %c0_i32_0 = arith.constant 0 : i32
    %c0_i32_1 = arith.constant 0 : i32
    return %c0_i32, %c0_i32_0 : i32, i32
  }
  func.func @transform_7(%arg0: i32) -> (i32, i32) {
    %c0_i32 = arith.constant 0 : i32
    %c0_i32_0 = arith.constant 0 : i32
    %c0_i32_1 = arith.constant 0 : i32
    return %c0_i32, %c0_i32_0 : i32, i32
  }
  func.func @transform_8(%arg0: i32) -> (i32, i32) {
    %c0_i32 = arith.constant 0 : i32
    %c0_i32_0 = arith.constant 0 : i32
    %c0_i32_1 = arith.constant 0 : i32
    return %c0_i32, %c0_i32_0 : i32, i32
  }
  func.func @transform_9(%arg0: i32) -> (i32, i32) {
    %c0_i32 = arith.constant 0 : i32
    %c0_i32_0 = arith.constant 0 : i32
    %c0_i32_1 = arith.constant 0 : i32
    return %c0_i32, %c0_i32_0 : i32, i32
  }
}

</mosaic_0001>

<llo_original>
// kernel: tpu_custom_call.1
$region0: #{tpu_custom_call.1}
  #allocation0 [shape = 'u32[]', space=smem, size = 0x4, offset = 0x4, fixed_abs, tag = 'smem constant byte address 0x4 - core index']
  #allocation1 [shape = 'u32[72,128]{1,0:T(1,128)}', space=vmem, size = 0x9000, scoped, tag = 'internal scratch']
  #allocation2 [shape = 'bf16[256,128]{1,0:T(8,128)(2,1)}', space=vmem, size = 0x10000, scoped, tag = 'scratch operand']
  #allocation3 [shape = 'f32[8,128]{1,0:T(8,128)}', space=vmem, size = 0x1000, scoped, tag = 'scratch operand']
  %s0 = inlined_call_operand.hbm [shape: bf16[256,128], index: 0, kind: input, shape index: {}]
  %s1 = inlined_call_operand.hbm [shape: bf16[256,256], index: 1, kind: input, shape index: {}]
  %s2 = inlined_call_operand.hbm [shape: bf16[8,256], index: 2, kind: input, shape index: {}]
  %s3 = inlined_call_operand.hbm [shape: bf16[128,128], index: 3, kind: input, shape index: {}]
  %s4 = inlined_call_operand.vmem [shape: f32[1,128], index: 4, kind: input, shape index: {}]
  %s5 = inlined_call_operand.hbm [shape: bf16[128,128], index: 5, kind: input, shape index: {}]
  %s6 = inlined_call_operand.vmem [shape: f32[1,128], index: 6, kind: input, shape index: {}]
  %s7 = inlined_call_operand.hbm [shape: f32[128,128], index: 7, kind: input, shape index: {}]
  %s8 = inlined_call_operand.vmem [shape: f32[1,128], index: 8, kind: input, shape index: {}]
  %s9 = inlined_call_operand.hbm [shape: f32[8,128], index: 9, kind: output, shape index: {}]
  %s10 = sld [smem:[#allocation0]]
  $region78: #{tpu_custom_call.1} parent=0
    _
  %s12 = ssub.s32 1, %s10
  %s13 = scalar_select 0, %s12, %s10
  $region1: #{tpu_custom_call.1} parent=0
    #allocation4 [shape = 'u8[65536]{0}', space=vmem, size = 0x10000, scoped, tag = 'input window, operand 0, single buffered']
    #allocation5 [shape = 's32[1]{0}', space=sflag, size = 0x4, scoped, tag = 'scoped memory for tpu_custom_call.1']
    #allocation6 [shape = 's32[1]{0}', space=sflag, size = 0x4, scoped, tag = 'scoped memory for tpu_custom_call.1']
    #allocation7 [shape = 'u8[131072]{0}', space=vmem, size = 0x20000, scoped, tag = 'input window, operand 1, single buffered']
    #allocation8 [shape = 's32[1]{0}', space=sflag, size = 0x4, scoped, tag = 'scoped memory for tpu_custom_call.1']
    #allocation9 [shape = 'u8[4096]{0}', space=vmem, size = 0x1000, scoped, tag = 'input window, operand 2, single buffered']
    #allocation10 [shape = 'u8[32768]{0}', space=vmem, size = 0x8000, scoped, tag = 'input window, operand 3, single buffered']
    #allocation11 [shape = 's32[1]{0}', space=sflag, size = 0x4, scoped, tag = 'scoped memory for tpu_custom_call.1']
    #allocation12 [shape = 'u8[32768]{0}', space=vmem, size = 0x8000, scoped, tag = 'input window, operand 5, single buffered']
    #allocation13 [shape = 'u8[65536]{0}', space=vmem, size = 0x10000, scoped, tag = 'input window, operand 7, single buffered']
    #allocation14 [shape = 's32[1]{0}', space=sflag, size = 0x4, scoped, tag = 'scoped memory for tpu_custom_call.1']
    #allocation15 [shape = 'u8[4096]{0}', space=vmem, size = 0x1000, scoped, tag = 'output window, operand 0, single buffered']
    %14 = vsyncpa [#allocation5], 0
    %15 = vsyncpa [#allocation8], 0
    %16 = vsyncpa [#allocation11], 0
    %17 = vsyncpa [#allocation14], 0
    %18 = vsyncpa [#allocation6], 0
    // Predicated region
    $region2: #{tpu_custom_call.1} parent=1 // pred_check
      _
    $region3: #{tpu_custom_call.1} parent=1 // pred_check_branch
      %20 = sbr.rel (0) target = $region5
    $region4: #{tpu_custom_call.1} parent=1 // pred_region
      %22 = vsyncadd [#allocation5], 0
      %s23 = sshll.u32 %s0, 4
      %s24 = int_to_ptr.hbm [resolvable:$true] %s23
      %s25 = sshll.u32 [#allocation4], 4
      %s26 = int_to_ptr.vmem [resolvable:$true] %s25
      %31 = dma.hbm_to_vmem [thread:$0]  %s24, 2048, %s26, [#allocation5], 64, 64, 4
    $region5: #{tpu_custom_call.1} parent=1 // pred_fallthru
      _
    // Predicated region
    $region6: #{tpu_custom_call.1} parent=1 // pred_check
      _
    $region7: #{tpu_custom_call.1} parent=1 // pred_check_branch
      %33 = sbr.rel (0) target = $region9
    $region8: #{tpu_custom_call.1} parent=1 // pred_region
      %35 = vsyncadd [#allocation8], 0
      %s36 = sshll.u32 %s1, 4
      %s37 = int_to_ptr.hbm [resolvable:$true] %s36
      %s38 = sshll.u32 [#allocation7], 4
      %s39 = int_to_ptr.vmem [resolvable:$true] %s38
      %44 = dma.hbm_to_vmem [thread:$0]  %s37, 4096, %s39, [#allocation8], 128, 128, 8
    $region9: #{tpu_custom_call.1} parent=1 // pred_fallthru
      _
    // Predicated region
    $region10: #{tpu_custom_call.1} parent=1 // pred_check
      _
    $region11: #{tpu_custom_call.1} parent=1 // pred_check_branch
      %46 = sbr.rel (0) target = $region13
    $region12: #{tpu_custom_call.1} parent=1 // pred_region
      %48 = vsyncadd [#allocation8], 0
      %s50 = sshll.u32 %s2, 4
      %s51 = int_to_ptr.hbm [resolvable:$true] %s50
      %s52 = sshll.u32 [#allocation9], 4
      %s53 = int_to_ptr.vmem [resolvable:$true] %s52
      %55 = dma.hbm_to_vmem [thread:$0]  %s51, 128, %s53, [#allocation8]
    $region13: #{tpu_custom_call.1} parent=1 // pred_fallthru
      _
    // Predicated region
    $region14: #{tpu_custom_call.1} parent=1 // pred_check
      _
    $region15: #{tpu_custom_call.1} parent=1 // pred_check_branch
      %57 = sbr.rel (0) target = $region17
    $region16: #{tpu_custom_call.1} parent=1 // pred_region
      %59 = vsyncadd [#allocation11], 0
      %s60 = sshll.u32 %s3, 4
      %s61 = int_to_ptr.hbm [resolvable:$true] %s60
      %s62 = sshll.u32 [#allocation10], 4
      %s63 = int_to_ptr.vmem [resolvable:$true] %s62
      %68 = dma.hbm_to_vmem [thread:$0]  %s61, 1024, %s63, [#allocation11], 64, 64, 4
    $region17: #{tpu_custom_call.1} parent=1 // pred_fallthru
      _
    // Predicated region
    $region18: #{tpu_custom_call.1} parent=1 // pred_check
      _
    $region19: #{tpu_custom_call.1} parent=1 // pred_check_branch
      %70 = sbr.rel (0) target = $region21
    $region20: #{tpu_custom_call.1} parent=1 // pred_region
      _
    $region21: #{tpu_custom_call.1} parent=1 // pred_fallthru
      _
    // Predicated region
    $region22: #{tpu_custom_call.1} parent=1 // pred_check
      _
    $region23: #{tpu_custom_call.1} parent=1 // pred_check_branch
      %72 = sbr.rel (0) target = $region25
    $region24: #{tpu_custom_call.1} parent=1 // pred_region
      %74 = vsyncadd [#allocation11], 0
      %s75 = sshll.u32 %s5, 4
      %s76 = int_to_ptr.hbm [resolvable:$true] %s75
      %s77 = sshll.u32 [#allocation12], 4
      %s78 = int_to_ptr.vmem [resolvable:$true] %s77
      %83 = dma.hbm_to_vmem [thread:$0]  %s76, 1024, %s78, [#allocation11], 64, 64, 4
    $region25: #{tpu_custom_call.1} parent=1 // pred_fallthru
      _
    // Predicated region
    $region26: #{tpu_custom_call.1} parent=1 // pred_check
      _
    $region27: #{tpu_custom_call.1} parent=1 // pred_check_branch
      %85 = sbr.rel (0) target = $region29
    $region28: #{tpu_custom_call.1} parent=1 // pred_region
      _
    $region29: #{tpu_custom_call.1} parent=1 // pred_fallthru
      _
    // Predicated region
    $region30: #{tpu_custom_call.1} parent=1 // pred_check
      _
    $region31: #{tpu_custom_call.1} parent=1 // pred_check_branch
      %87 = sbr.rel (0) target = $region33
    $region32: #{tpu_custom_call.1} parent=1 // pred_region
      %89 = vsyncadd [#allocation14], 0
      %s90 = sshll.u32 %s7, 4
      %s91 = int_to_ptr.hbm [resolvable:$true] %s90
      %s92 = sshll.u32 [#allocation13], 4
      %s93 = int_to_ptr.vmem [resolvable:$true] %s92
      %98 = dma.hbm_to_vmem [thread:$0]  %s91, 2048, %s93, [#allocation14], 128, 128, 8
    $region33: #{tpu_custom_call.1} parent=1 // pred_fallthru
      _
    // Predicated region
    $region34: #{tpu_custom_call.1} parent=1 // pred_check
      _
    $region35: #{tpu_custom_call.1} parent=1 // pred_check_branch
      %100 = sbr.rel (0) target = $region37
    $region36: #{tpu_custom_call.1} parent=1 // pred_region
      _
    $region37: #{tpu_custom_call.1} parent=1 // pred_fallthru
      _
    // Predicated region
    $region38: #{tpu_custom_call.1} parent=1 // pred_check
      _
    $region39: #{tpu_custom_call.1} parent=1 // pred_check_branch
      %102 = sbr.rel (0) target = $region41
    $region40: #{tpu_custom_call.1} parent=1 // pred_region
      %104 = dma.done [#allocation5], 2048
    $region41: #{tpu_custom_call.1} parent=1 // pred_fallthru
      _
    // Predicated region
    $region42: #{tpu_custom_call.1} parent=1 // pred_check
      _
    $region43: #{tpu_custom_call.1} parent=1 // pred_check_branch
      %106 = sbr.rel (0) target = $region45
    $region44: #{tpu_custom_call.1} parent=1 // pred_region
      %108 = dma.done [#allocation8], 4096
    $region45: #{tpu_custom_call.1} parent=1 // pred_fallthru
      _
    // Predicated region
    $region46: #{tpu_custom_call.1} parent=1 // pred_check
      _
    $region47: #{tpu_custom_call.1} parent=1 // pred_check_branch
      %110 = sbr.rel (0) target = $region49
    $region48: #{tpu_custom_call.1} parent=1 // pred_region
      %112 = dma.done [#allocation8], 128
    $region49: #{tpu_custom_call.1} parent=1 // pred_fallthru
      _
    // Predicated region
    $region50: #{tpu_custom_call.1} parent=1 // pred_check
      _
    $region51: #{tpu_custom_call.1} parent=1 // pred_check_branch
      %114 = sbr.rel (0) target = $region53
    $region52: #{tpu_custom_call.1} parent=1 // pred_region
      %116 = dma.done [#allocation11], 1024
    $region53: #{tpu_custom_call.1} parent=1 // pred_fallthru
      _
    // Predicated region
    $region54: #{tpu_custom_call.1} parent=1 // pred_check
      _
    $region55: #{tpu_custom_call.1} parent=1 // pred_check_branch
      %118 = sbr.rel (0) target = $region57
    $region56: #{tpu_custom_call.1} parent=1 // pred_region
      %120 = dma.done [#allocation11], 1024
    $region57: #{tpu_custom_call.1} parent=1 // pred_fallthru
      _
    // Predicated region
    $region58: #{tpu_custom_call.1} parent=1 // pred_check
      _
    $region59: #{tpu_custom_call.1} parent=1 // pred_check_branch
      %122 = sbr.rel (0) target = $region61
    $region60: #{tpu_custom_call.1} parent=1 // pred_region
      %124 = dma.done [#allocation14], 2048
    $region61: #{tpu_custom_call.1} parent=1 // pred_fallthru
      _
    %p125 = scmp.eq.s32.totalorder 0, 0
    // Predicated region
    $region62: #{tpu_custom_call.1} parent=1 // pred_check
      %p126 = pneg %p125
    $region63: #{tpu_custom_call.1} parent=1 // pred_check_branch
      %128 = sbr.rel (%p126) target = $region65
    $region64: #{tpu_custom_call.1} parent=1 // pred_region
      %v129 = vld [vmem:[#allocation4] sm:$0xf]
      %v130 = vld [vmem:[#allocation4 + $0x4] sm:$0xf]
      %v131 = vld [vmem:[#allocation4 + $0x8] sm:$0xf]
      %v132 = vld [vmem:[#allocation4 + $0xc] sm:$0xf]
      %v133 = vld [vmem:[#allocation4 + $0x10] sm:$0xf]
      %v134 = vld [vmem:[#allocation4 + $0x14] sm:$0xf]
      %v135 = vld [vmem:[#allocation4 + $0x18] sm:$0xf]
      %v136 = vld [vmem:[#allocation4 + $0x1c] sm:$0xf]
      %v137 = vld [vmem:[#allocation4 + $0x20] sm:$0xf]
      %v138 = vld [vmem:[#allocation4 + $0x24] sm:$0xf]
      %v139 = vld [vmem:[#allocation4 + $0x28] sm:$0xf]
      %v140 = vld [vmem:[#allocation4 + $0x2c] sm:$0xf]
      %v141 = vld [vmem:[#allocation4 + $0x30] sm:$0xf]
      %v142 = vld [vmem:[#allocation4 + $0x34] sm:$0xf]
      %v143 = vld [vmem:[#allocation4 + $0x38] sm:$0xf]
      %v144 = vld [vmem:[#allocation4 + $0x3c] sm:$0xf]
      %v145 = vld [vmem:[#allocation4 + $0x40] sm:$0xf]
      %v146 = vld [vmem:[#allocation4 + $0x44] sm:$0xf]
      %v147 = vld [vmem:[#allocation4 + $0x48] sm:$0xf]
      %v148 = vld [vmem:[#allocation4 + $0x4c] sm:$0xf]
      %v149 = vld [vmem:[#allocation4 + $0x50] sm:$0xf]
      %v150 = vld [vmem:[#allocation4 + $0x54] sm:$0xf]
      %v151 = vld [vmem:[#allocation4 + $0x58] sm:$0xf]
      %v152 = vld [vmem:[#allocation4 + $0x5c] sm:$0xf]
      %v153 = vld [vmem:[#allocation4 + $0x60] sm:$0xf]
      %v154 = vld [vmem:[#allocation4 + $0x64] sm:$0xf]
      %v155 = vld [vmem:[#allocation4 + $0x68] sm:$0xf]
      %v156 = vld [vmem:[#allocation4 + $0x6c] sm:$0xf]
      %v157 = vld [vmem:[#allocation4 + $0x70] sm:$0xf]
      %v158 = vld [vmem:[#allocation4 + $0x74] sm:$0xf]
      %v159 = vld [vmem:[#allocation4 + $0x78] sm:$0xf]
      %v160 = vld [vmem:[#allocation4 + $0x7c] sm:$0xf]
      %v161 = vld [vmem:[#allocation10] sm:$0xf]
      %v162 = vld [vmem:[#allocation10 + $0x4] sm:$0xf]
      %v163 = vld [vmem:[#allocation10 + $0x8] sm:$0xf]
      %v164 = vld [vmem:[#allocation10 + $0xc] sm:$0xf]
      %v165 = vld [vmem:[#allocation10 + $0x10] sm:$0xf]
      %v166 = vld [vmem:[#allocation10 + $0x14] sm:$0xf]
      %v167 = vld [vmem:[#allocation10 + $0x18] sm:$0xf]
      %v168 = vld [vmem:[#allocation10 + $0x1c] sm:$0xf]
      %v169 = vld [vmem:[#allocation10 + $0x20] sm:$0xf]
      %v170 = vld [vmem:[#allocation10 + $0x24] sm:$0xf]
      %v171 = vld [vmem:[#allocation10 + $0x28] sm:$0xf]
      %v172 = vld [vmem:[#allocation10 + $0x2c] sm:$0xf]
      %v173 = vld [vmem:[#allocation10 + $0x30] sm:$0xf]
      %v174 = vld [vmem:[#allocation10 + $0x34] sm:$0xf]
      %v175 = vld [vmem:[#allocation10 + $0x38] sm:$0xf]
      %v176 = vld [vmem:[#allocation10 + $0x3c] sm:$0xf]
      %v177 = vld [vmem:[%s4] sm:$0x1]
      %v179 = vperm.slane %v177, 0
      %v213 = vunpack.c.l.b16 %v129
      %v214 = vunpack.c.l.b16 %v130
      %v215 = vunpack.c.l.b16 %v131
      %v216 = vunpack.c.l.b16 %v132
      %v217 = vunpack.c.l.b16 %v133
      %v218 = vunpack.c.l.b16 %v134
      %v219 = vunpack.c.l.b16 %v135
      %v220 = vunpack.c.l.b16 %v136
      %v221 = vunpack.c.l.b16 %v137
      %v222 = vunpack.c.l.b16 %v138
      %v223 = vunpack.c.l.b16 %v139
      %v224 = vunpack.c.l.b16 %v140
      %v225 = vunpack.c.l.b16 %v141
      %v226 = vunpack.c.l.b16 %v142
      %v227 = vunpack.c.l.b16 %v143
      %v228 = vunpack.c.l.b16 %v144
      %v229 = vunpack.c.l.b16 %v145
      %v230 = vunpack.c.l.b16 %v146
      %v231 = vunpack.c.l.b16 %v147
      %v232 = vunpack.c.l.b16 %v148
      %v233 = vunpack.c.l.b16 %v149
      %v234 = vunpack.c.l.b16 %v150
      %v235 = vunpack.c.l.b16 %v151
      %v236 = vunpack.c.l.b16 %v152
      %v237 = vunpack.c.l.b16 %v153
      %v238 = vunpack.c.l.b16 %v154
      %v239 = vunpack.c.l.b16 %v155
      %v240 = vunpack.c.l.b16 %v156
      %v241 = vunpack.c.l.b16 %v157
      %v242 = vunpack.c.l.b16 %v158
      %v243 = vunpack.c.l.b16 %v159
      %v244 = vunpack.c.l.b16 %v160
      %v245 = vpack.c.b16 %v214, %v213
      %v246 = vpack.c.b16 %v216, %v215
      %v247 = vpack.c.b16 %v218, %v217
      %v248 = vpack.c.b16 %v220, %v219
      %v249 = vpack.c.b16 %v222, %v221
      %v250 = vpack.c.b16 %v224, %v223
      %v251 = vpack.c.b16 %v226, %v225
      %v252 = vpack.c.b16 %v228, %v227
      %v253 = vpack.c.b16 %v230, %v229
      %v254 = vpack.c.b16 %v232, %v231
      %v255 = vpack.c.b16 %v234, %v233
      %v256 = vpack.c.b16 %v236, %v235
      %v257 = vpack.c.b16 %v238, %v237
      %v258 = vpack.c.b16 %v240, %v239
      %v259 = vpack.c.b16 %v242, %v241
      %v260 = vpack.c.b16 %v244, %v243
      %v293 = vunpack.c.l.b16 %v161
      %v294 = vunpack.c.l.b16 %v162
      %v295 = vunpack.c.l.b16 %v163
      %v296 = vunpack.c.l.b16 %v164
      %v297 = vunpack.c.l.b16 %v165
      %v298 = vunpack.c.l.b16 %v166
      %v299 = vunpack.c.l.b16 %v167
      %v300 = vunpack.c.l.b16 %v168
      %v301 = vunpack.c.l.b16 %v169
      %v302 = vunpack.c.l.b16 %v170
      %v303 = vunpack.c.l.b16 %v171
      %v304 = vunpack.c.l.b16 %v172
      %v305 = vunpack.c.l.b16 %v173
      %v306 = vunpack.c.l.b16 %v174
      %v307 = vunpack.c.l.b16 %v175
      %v308 = vunpack.c.l.b16 %v176
      %v309 = vpack.c.b16 %v294, %v293
      %v310 = vpack.c.b16 %v296, %v295
      %v311 = vpack.c.b16 %v298, %v297
      %v312 = vpack.c.b16 %v300, %v299
      %v313 = vpack.c.b16 %v302, %v301
      %v314 = vpack.c.b16 %v304, %v303
      %v315 = vpack.c.b16 %v306, %v305
      %v316 = vpack.c.b16 %v308, %v307
      %325 = vmatpush.bf16.msra.mxu0 %v316
      %326 = vmatpush.bf16.msra.mxu0 %v315
      %327 = vmatpush.bf16.msra.mxu0 %v314
      %328 = vmatpush.bf16.msra.mxu0 %v313
      %329 = vmatpush.bf16.msra.mxu0 %v312
      %330 = vmatpush.bf16.msra.mxu0 %v311
      %331 = vmatpush.bf16.msra.mxu0 %v310
      %332 = vmatpush.bf16.msra.mxu0 %v309
      %333 = vmatmul.bf16.gmra.mxu0 %v245
      %v334 = vpop.f32.mrf.mxu0
      %v335 = vadd.f32 %v179, %v334
      %v336 = vpop.f32.mrf.mxu0
      %v337 = vadd.f32 %v179, %v336
      %338 = vmatmul.bf16.gmra.mxu0 %v246
      %v339 = vpop.f32.mrf.mxu0
      %v340 = vadd.f32 %v179, %v339
      %v341 = vpop.f32.mrf.mxu0
      %v342 = vadd.f32 %v179, %v341
      %343 = vmatmul.bf16.gmra.mxu0 %v247
      %v344 = vpop.f32.mrf.mxu0
      %v345 = vadd.f32 %v179, %v344
      %v346 = vpop.f32.mrf.mxu0
      %v347 = vadd.f32 %v179, %v346
      %348 = vmatmul.bf16.gmra.mxu0 %v248
      %v349 = vpop.f32.mrf.mxu0
      %v350 = vadd.f32 %v179, %v349
      %v351 = vpop.f32.mrf.mxu0
      %v352 = vadd.f32 %v179, %v351
      %353 = vmatmul.bf16.gmra.mxu0 %v249
      %v354 = vpop.f32.mrf.mxu0
      %v355 = vadd.f32 %v179, %v354
      %v356 = vpop.f32.mrf.mxu0
      %v357 = vadd.f32 %v179, %v356
      %358 = vmatmul.bf16.gmra.mxu0 %v250
      %v359 = vpop.f32.mrf.mxu0
      %v360 = vadd.f32 %v179, %v359
      %v361 = vpop.f32.mrf.mxu0
      %v362 = vadd.f32 %v179, %v361
      %363 = vmatmul.bf16.gmra.mxu0 %v251
      %v364 = vpop.f32.mrf.mxu0
      %v365 = vadd.f32 %v179, %v364
      %v366 = vpop.f32.mrf.mxu0
      %v367 = vadd.f32 %v179, %v366
      %368 = vmatmul.bf16.gmra.mxu0 %v252
      %v369 = vpop.f32.mrf.mxu0
      %v370 = vadd.f32 %v179, %v369
      %v371 = vpop.f32.mrf.mxu0
      %v372 = vadd.f32 %v179, %v371
      %373 = vmatmul.bf16.gmra.mxu0 %v253
      %v374 = vpop.f32.mrf.mxu0
      %v375 = vadd.f32 %v179, %v374
      %v376 = vpop.f32.mrf.mxu0
      %v377 = vadd.f32 %v179, %v376
      %378 = vmatmul.bf16.gmra.mxu0 %v254
      %v379 = vpop.f32.mrf.mxu0
      %v380 = vadd.f32 %v179, %v379
      %v381 = vpop.f32.mrf.mxu0
      %v382 = vadd.f32 %v179, %v381
      %383 = vmatmul.bf16.gmra.mxu0 %v255
      %v384 = vpop.f32.mrf.mxu0
      %v385 = vadd.f32 %v179, %v384
      %v386 = vpop.f32.mrf.mxu0
      %v387 = vadd.f32 %v179, %v386
      %388 = vmatmul.bf16.gmra.mxu0 %v256
      %v389 = vpop.f32.mrf.mxu0
      %v390 = vadd.f32 %v179, %v389
      %v391 = vpop.f32.mrf.mxu0
      %v392 = vadd.f32 %v179, %v391
      %393 = vmatmul.bf16.gmra.mxu0 %v257
      %v394 = vpop.f32.mrf.mxu0
      %v395 = vadd.f32 %v179, %v394
      %v396 = vpop.f32.mrf.mxu0
      %v397 = vadd.f32 %v179, %v396
      %398 = vmatmul.bf16.gmra.mxu0 %v258
      %v399 = vpop.f32.mrf.mxu0
      %v400 = vadd.f32 %v179, %v399
      %v401 = vpop.f32.mrf.mxu0
      %v402 = vadd.f32 %v179, %v401
      %403 = vmatmul.bf16.gmra.mxu0 %v259
      %v404 = vpop.f32.mrf.mxu0
      %v405 = vadd.f32 %v179, %v404
      %v406 = vpop.f32.mrf.mxu0
      %v407 = vadd.f32 %v179, %v406
      %408 = vmatmul.bf16.gmra.mxu0 %v260
      %v409 = vpop.f32.mrf.mxu0
      %v410 = vadd.f32 %v179, %v409
      %v411 = vpop.f32.mrf.mxu0
      %v412 = vadd.f32 %v179, %v411
      %413 = vdwg.mxu0
      %v414 = vmax.f32 %v335, 0.0
      %v415 = vmax.f32 %v337, 0.0
      %v416 = vmax.f32 %v340, 0.0
      %v417 = vmax.f32 %v342, 0.0
      %v418 = vmax.f32 %v345, 0.0
      %v419 = vmax.f32 %v347, 0.0
      %v420 = vmax.f32 %v350, 0.0
      %v421 = vmax.f32 %v352, 0.0
      %v422 = vmax.f32 %v355, 0.0
      %v423 = vmax.f32 %v357, 0.0
      %v424 = vmax.f32 %v360, 0.0
      %v425 = vmax.f32 %v362, 0.0
      %v426 = vmax.f32 %v365, 0.0
      %v427 = vmax.f32 %v367, 0.0
      %v428 = vmax.f32 %v370, 0.0
      %v429 = vmax.f32 %v372, 0.0
      %v430 = vmax.f32 %v375, 0.0
      %v431 = vmax.f32 %v377, 0.0
      %v432 = vmax.f32 %v380, 0.0
      %v433 = vmax.f32 %v382, 0.0
      %v434 = vmax.f32 %v385, 0.0
      %v435 = vmax.f32 %v387, 0.0
      %v436 = vmax.f32 %v390, 0.0
      %v437 = vmax.f32 %v392, 0.0
      %v438 = vmax.f32 %v395, 0.0
      %v439 = vmax.f32 %v397, 0.0
      %v440 = vmax.f32 %v400, 0.0
      %v441 = vmax.f32 %v402, 0.0
      %v442 = vmax.f32 %v405, 0.0
      %v443 = vmax.f32 %v407, 0.0
      %v444 = vmax.f32 %v410, 0.0
      %v445 = vmax.f32 %v412, 0.0
      %v446 = vpack.c.bf16 %v414, %v414
      %v447 = vpack.c.bf16 %v415, %v415
      %v448 = vpack.c.bf16 %v416, %v416
      %v449 = vpack.c.bf16 %v417, %v417
      %v450 = vpack.c.bf16 %v418, %v418
      %v451 = vpack.c.bf16 %v419, %v419
      %v452 = vpack.c.bf16 %v420, %v420
      %v453 = vpack.c.bf16 %v421, %v421
      %v454 = vpack.c.bf16 %v422, %v422
      %v455 = vpack.c.bf16 %v423, %v423
      %v456 = vpack.c.bf16 %v424, %v424
      %v457 = vpack.c.bf16 %v425, %v425
      %v458 = vpack.c.bf16 %v426, %v426
      %v459 = vpack.c.bf16 %v427, %v427
      %v460 = vpack.c.bf16 %v428, %v428
      %v461 = vpack.c.bf16 %v429, %v429
      %v462 = vpack.c.bf16 %v430, %v430
      %v463 = vpack.c.bf16 %v431, %v431
      %v464 = vpack.c.bf16 %v432, %v432
      %v465 = vpack.c.bf16 %v433, %v433
      %v466 = vpack.c.bf16 %v434, %v434
      %v467 = vpack.c.bf16 %v435, %v435
      %v468 = vpack.c.bf16 %v436, %v436
      %v469 = vpack.c.bf16 %v437, %v437
      %v470 = vpack.c.bf16 %v438, %v438
      %v471 = vpack.c.bf16 %v439, %v439
      %v472 = vpack.c.bf16 %v440, %v440
      %v473 = vpack.c.bf16 %v441, %v441
      %v474 = vpack.c.bf16 %v442, %v442
      %v475 = vpack.c.bf16 %v443, %v443
      %v476 = vpack.c.bf16 %v444, %v444
      %v477 = vpack.c.bf16 %v445, %v445
      %478 = vst [vmem:[#allocation2] sm:$0xf] %v446
      %479 = vst [vmem:[#allocation2 + $0x4] sm:$0xf] %v447
      %480 = vst [vmem:[#allocation2 + $0x8] sm:$0xf] %v448
      %481 = vst [vmem:[#allocation2 + $0xc] sm:$0xf] %v449
      %482 = vst [vmem:[#allocation2 + $0x10] sm:$0xf] %v450
      %483 = vst [vmem:[#allocation2 + $0x14] sm:$0xf] %v451
      %484 = vst [vmem:[#allocation2 + $0x18] sm:$0xf] %v452
      %485 = vst [vmem:[#allocation2 + $0x1c] sm:$0xf] %v453
      %486 = vst [vmem:[#allocation2 + $0x20] sm:$0xf] %v454
      %487 = vst [vmem:[#allocation2 + $0x24] sm:$0xf] %v455
      %488 = vst [vmem:[#allocation2 + $0x28] sm:$0xf] %v456
      %489 = vst [vmem:[#allocation2 + $0x2c] sm:$0xf] %v457
      %490 = vst [vmem:[#allocation2 + $0x30] sm:$0xf] %v458
      %491 = vst [vmem:[#allocation2 + $0x34] sm:$0xf] %v459
      %492 = vst [vmem:[#allocation2 + $0x38] sm:$0xf] %v460
      %493 = vst [vmem:[#allocation2 + $0x3c] sm:$0xf] %v461
      %494 = vst [vmem:[#allocation2 + $0x40] sm:$0xf] %v462
      %495 = vst [vmem:[#allocation2 + $0x44] sm:$0xf] %v463
      %496 = vst [vmem:[#allocation2 + $0x48] sm:$0xf] %v464
      %497 = vst [vmem:[#allocation2 + $0x4c] sm:$0xf] %v465
      %498 = vst [vmem:[#allocation2 + $0x50] sm:$0xf] %v466
      %499 = vst [vmem:[#allocation2 + $0x54] sm:$0xf] %v467
      %500 = vst [vmem:[#allocation2 + $0x58] sm:$0xf] %v468
      %501 = vst [vmem:[#allocation2 + $0x5c] sm:$0xf] %v469
      %502 = vst [vmem:[#allocation2 + $0x60] sm:$0xf] %v470
      %503 = vst [vmem:[#allocation2 + $0x64] sm:$0xf] %v471
      %504 = vst [vmem:[#allocation2 + $0x68] sm:$0xf] %v472
      %505 = vst [vmem:[#allocation2 + $0x6c] sm:$0xf] %v473
      %506 = vst [vmem:[#allocation2 + $0x70] sm:$0xf] %v474
      %507 = vst [vmem:[#allocation2 + $0x74] sm:$0xf] %v475
      %508 = vst [vmem:[#allocation2 + $0x78] sm:$0xf] %v476
      %509 = vst [vmem:[#allocation2 + $0x7c] sm:$0xf] %v477
      %510 = vst [vmem:[#allocation3] sm:$0xff] 0.0
    $region65: #{tpu_custom_call.1} parent=1 // pred_fallthru
      _
    %v511 = vld [vmem:[#allocation7] sm:$0xff]
    %v512 = vld [vmem:[#allocation7 + $0x8] sm:$0xff]
    %v513 = vld [vmem:[#allocation7 + $0x10] sm:$0xff]
    %v514 = vld [vmem:[#allocation7 + $0x18] sm:$0xff]
    %v515 = vld [vmem:[#allocation7 + $0x20] sm:$0xff]
    %v516 = vld [vmem:[#allocation7 + $0x28] sm:$0xff]
    %v517 = vld [vmem:[#allocation7 + $0x30] sm:$0xff]
    %v518 = vld [vmem:[#allocation7 + $0x38] sm:$0xff]
    %v519 = vld [vmem:[#allocation7 + $0x40] sm:$0xff]
    %v520 = vld [vmem:[#allocation7 + $0x48] sm:$0xff]
    %v521 = vld [vmem:[#allocation7 + $0x50] sm:$0xff]
    %v522 = vld [vmem:[#allocation7 + $0x58] sm:$0xff]
    %v523 = vld [vmem:[#allocation7 + $0x60] sm:$0xff]
    %v524 = vld [vmem:[#allocation7 + $0x68] sm:$0xff]
    %v525 = vld [vmem:[#allocation7 + $0x70] sm:$0xff]
    %v526 = vld [vmem:[#allocation7 + $0x78] sm:$0xff]
    %v527 = vld [vmem:[#allocation7 + $0x80] sm:$0xff]
    %v528 = vld [vmem:[#allocation7 + $0x88] sm:$0xff]
    %v529 = vld [vmem:[#allocation7 + $0x90] sm:$0xff]
    %v530 = vld [vmem:[#allocation7 + $0x98] sm:$0xff]
    %v531 = vld [vmem:[#allocation7 + $0xa0] sm:$0xff]
    %v532 = vld [vmem:[#allocation7 + $0xa8] sm:$0xff]
    %v533 = vld [vmem:[#allocation7 + $0xb0] sm:$0xff]
    %v534 = vld [vmem:[#allocation7 + $0xb8] sm:$0xff]
    %v535 = vld [vmem:[#allocation7 + $0xc0] sm:$0xff]
    %v536 = vld [vmem:[#allocation7 + $0xc8] sm:$0xff]
    %v537 = vld [vmem:[#allocation7 + $0xd0] sm:$0xff]
    %v538 = vld [vmem:[#allocation7 + $0xd8] sm:$0xff]
    %v539 = vld [vmem:[#allocation7 + $0xe0] sm:$0xff]
    %v540 = vld [vmem:[#allocation7 + $0xe8] sm:$0xff]
    %v541 = vld [vmem:[#allocation7 + $0xf0] sm:$0xff]
    %v542 = vld [vmem:[#allocation7 + $0xf8] sm:$0xff]
    %v543 = vld [vmem:[#allocation2] sm:$0xf]
    %v544 = vld [vmem:[#allocation2 + $0x4] sm:$0xf]
    %v545 = vld [vmem:[#allocation2 + $0x8] sm:$0xf]
    %v546 = vld [vmem:[#allocation2 + $0xc] sm:$0xf]
    %v547 = vld [vmem:[#allocation2 + $0x10] sm:$0xf]
    %v548 = vld [vmem:[#allocation2 + $0x14] sm:$0xf]
    %v549 = vld [vmem:[#allocation2 + $0x18] sm:$0xf]
    %v550 = vld [vmem:[#allocation2 + $0x1c] sm:$0xf]
    %v551 = vld [vmem:[#allocation2 + $0x20] sm:$0xf]
    %v552 = vld [vmem:[#allocation2 + $0x24] sm:$0xf]
    %v553 = vld [vmem:[#allocation2 + $0x28] sm:$0xf]
    %v554 = vld [vmem:[#allocation2 + $0x2c] sm:$0xf]
    %v555 = vld [vmem:[#allocation2 + $0x30] sm:$0xf]
    %v556 = vld [vmem:[#allocation2 + $0x34] sm:$0xf]
    %v557 = vld [vmem:[#allocation2 + $0x38] sm:$0xf]
    %v558 = vld [vmem:[#allocation2 + $0x3c] sm:$0xf]
    %v559 = vld [vmem:[#allocation2 + $0x40] sm:$0xf]
    %v560 = vld [vmem:[#allocation2 + $0x44] sm:$0xf]
    %v561 = vld [vmem:[#allocation2 + $0x48] sm:$0xf]
    %v562 = vld [vmem:[#allocation2 + $0x4c] sm:$0xf]
    %v563 = vld [vmem:[#allocation2 + $0x50] sm:$0xf]
    %v564 = vld [vmem:[#allocation2 + $0x54] sm:$0xf]
    %v565 = vld [vmem:[#allocation2 + $0x58] sm:$0xf]
    %v566 = vld [vmem:[#allocation2 + $0x5c] sm:$0xf]
    %v567 = vld [vmem:[#allocation2 + $0x60] sm:$0xf]
    %v568 = vld [vmem:[#allocation2 + $0x64] sm:$0xf]
    %v569 = vld [vmem:[#allocation2 + $0x68] sm:$0xf]
    %v570 = vld [vmem:[#allocation2 + $0x6c] sm:$0xf]
    %v571 = vld [vmem:[#allocation2 + $0x70] sm:$0xf]
    %v572 = vld [vmem:[#allocation2 + $0x74] sm:$0xf]
    %v573 = vld [vmem:[#allocation2 + $0x78] sm:$0xf]
    %v574 = vld [vmem:[#allocation2 + $0x7c] sm:$0xf]
    %v607 = vunpack.c.l.b16 %v511
    %v608 = vunpack.c.h.b16 %v511
    %v609 = vunpack.c.l.b16 %v512
    %v610 = vunpack.c.h.b16 %v512
    %v611 = vunpack.c.l.b16 %v513
    %v612 = vunpack.c.h.b16 %v513
    %v613 = vunpack.c.l.b16 %v514
    %v614 = vunpack.c.h.b16 %v514
    %v615 = vunpack.c.l.b16 %v515
    %v616 = vunpack.c.h.b16 %v515
    %v617 = vunpack.c.l.b16 %v516
    %v618 = vunpack.c.h.b16 %v516
    %v619 = vunpack.c.l.b16 %v517
    %v620 = vunpack.c.h.b16 %v517
    %v621 = vunpack.c.l.b16 %v518
    %v622 = vunpack.c.h.b16 %v518
    %v623 = vunpack.c.l.b16 %v519
    %v624 = vunpack.c.h.b16 %v519
    %v625 = vunpack.c.l.b16 %v520
    %v626 = vunpack.c.h.b16 %v520
    %v627 = vunpack.c.l.b16 %v521
    %v628 = vunpack.c.h.b16 %v521
    %v629 = vunpack.c.l.b16 %v522
    %v630 = vunpack.c.h.b16 %v522
    %v631 = vunpack.c.l.b16 %v523
    %v632 = vunpack.c.h.b16 %v523
    %v633 = vunpack.c.l.b16 %v524
    %v634 = vunpack.c.h.b16 %v524
    %v635 = vunpack.c.l.b16 %v525
    %v636 = vunpack.c.h.b16 %v525
    %v637 = vunpack.c.l.b16 %v526
    %v638 = vunpack.c.h.b16 %v526
    %v639 = vunpack.c.l.b16 %v527
    %v640 = vunpack.c.h.b16 %v527
    %v641 = vunpack.c.l.b16 %v528
    %v642 = vunpack.c.h.b16 %v528
    %v643 = vunpack.c.l.b16 %v529
    %v644 = vunpack.c.h.b16 %v529
    %v645 = vunpack.c.l.b16 %v530
    %v646 = vunpack.c.h.b16 %v530
    %v647 = vunpack.c.l.b16 %v531
    %v648 = vunpack.c.h.b16 %v531
    %v649 = vunpack.c.l.b16 %v532
    %v650 = vunpack.c.h.b16 %v532
    %v651 = vunpack.c.l.b16 %v533
    %v652 = vunpack.c.h.b16 %v533
    %v653 = vunpack.c.l.b16 %v534
    %v654 = vunpack.c.h.b16 %v534
    %v655 = vunpack.c.l.b16 %v535
    %v656 = vunpack.c.h.b16 %v535
    %v657 = vunpack.c.l.b16 %v536
    %v658 = vunpack.c.h.b16 %v536
    %v659 = vunpack.c.l.b16 %v537
    %v660 = vunpack.c.h.b16 %v537
    %v661 = vunpack.c.l.b16 %v538
    %v662 = vunpack.c.h.b16 %v538
    %v663 = vunpack.c.l.b16 %v539
    %v664 = vunpack.c.h.b16 %v539
    %v665 = vunpack.c.l.b16 %v540
    %v666 = vunpack.c.h.b16 %v540
    %v667 = vunpack.c.l.b16 %v541
    %v668 = vunpack.c.h.b16 %v541
    %v669 = vunpack.c.l.b16 %v542
    %v670 = vunpack.c.h.b16 %v542
    %v671 = vpack.c.b16 %v609, %v607
    %v672 = vpack.c.b16 %v610, %v608
    %v673 = vpack.c.b16 %v613, %v611
    %v674 = vpack.c.b16 %v614, %v612
    %v675 = vpack.c.b16 %v617, %v615
    %v676 = vpack.c.b16 %v618, %v616
    %v677 = vpack.c.b16 %v621, %v619
    %v678 = vpack.c.b16 %v622, %v620
    %v679 = vpack.c.b16 %v625, %v623
    %v680 = vpack.c.b16 %v626, %v624
    %v681 = vpack.c.b16 %v629, %v627
    %v682 = vpack.c.b16 %v630, %v628
    %v683 = vpack.c.b16 %v633, %v631
    %v684 = vpack.c.b16 %v634, %v632
    %v685 = vpack.c.b16 %v637, %v635
    %v686 = vpack.c.b16 %v638, %v636
    %v687 = vpack.c.b16 %v641, %v639
    %v688 = vpack.c.b16 %v642, %v640
    %v689 = vpack.c.b16 %v645, %v643
    %v690 = vpack.c.b16 %v646, %v644
    %v691 = vpack.c.b16 %v649, %v647
    %v692 = vpack.c.b16 %v650, %v648
    %v693 = vpack.c.b16 %v653, %v651
    %v694 = vpack.c.b16 %v654, %v652
    %v695 = vpack.c.b16 %v657, %v655
    %v696 = vpack.c.b16 %v658, %v656
    %v697 = vpack.c.b16 %v661, %v659
    %v698 = vpack.c.b16 %v662, %v660
    %v699 = vpack.c.b16 %v665, %v663
    %v700 = vpack.c.b16 %v666, %v664
    %v701 = vpack.c.b16 %v669, %v667
    %v702 = vpack.c.b16 %v670, %v668
    %v767 = vunpack.c.l.b16 %v543
    %v768 = vunpack.c.l.b16 %v544
    %v769 = vunpack.c.l.b16 %v545
    %v770 = vunpack.c.l.b16 %v546
    %v771 = vunpack.c.l.b16 %v547
    %v772 = vunpack.c.l.b16 %v548
    %v773 = vunpack.c.l.b16 %v549
    %v774 = vunpack.c.l.b16 %v550
    %v775 = vunpack.c.l.b16 %v551
    %v776 = vunpack.c.l.b16 %v552
    %v777 = vunpack.c.l.b16 %v553
    %v778 = vunpack.c.l.b16 %v554
    %v779 = vunpack.c.l.b16 %v555
    %v780 = vunpack.c.l.b16 %v556
    %v781 = vunpack.c.l.b16 %v557
    %v782 = vunpack.c.l.b16 %v558
    %v783 = vunpack.c.l.b16 %v559
    %v784 = vunpack.c.l.b16 %v560
    %v785 = vunpack.c.l.b16 %v561
    %v786 = vunpack.c.l.b16 %v562
    %v787 = vunpack.c.l.b16 %v563
    %v788 = vunpack.c.l.b16 %v564
    %v789 = vunpack.c.l.b16 %v565
    %v790 = vunpack.c.l.b16 %v566
    %v791 = vunpack.c.l.b16 %v567
    %v792 = vunpack.c.l.b16 %v568
    %v793 = vunpack.c.l.b16 %v569
    %v794 = vunpack.c.l.b16 %v570
    %v795 = vunpack.c.l.b16 %v571
    %v796 = vunpack.c.l.b16 %v572
    %v797 = vunpack.c.l.b16 %v573
    %v798 = vunpack.c.l.b16 %v574
    %v799 = vpack.c.b16 %v768, %v767
    %v800 = vpack.c.b16 %v770, %v769
    %v801 = vpack.c.b16 %v772, %v771
    %v802 = vpack.c.b16 %v774, %v773
    %v803 = vpack.c.b16 %v776, %v775
    %v804 = vpack.c.b16 %v778, %v777
    %v805 = vpack.c.b16 %v780, %v779
    %v806 = vpack.c.b16 %v782, %v781
    %v807 = vpack.c.b16 %v784, %v783
    %v808 = vpack.c.b16 %v786, %v785
    %v809 = vpack.c.b16 %v788, %v787
    %v810 = vpack.c.b16 %v790, %v789
    %v811 = vpack.c.b16 %v792, %v791
    %v812 = vpack.c.b16 %v794, %v793
    %v813 = vpack.c.b16 %v796, %v795
    %v814 = vpack.c.b16 %v798, %v797
    %831 = vmatpush.bf16.msra.mxu0 %v806
    %832 = vmatpush.bf16.msra.mxu0 %v805
    %833 = vmatpush.bf16.msra.mxu0 %v804
    %834 = vmatpush.bf16.msra.mxu0 %v803
    %835 = vmatpush.bf16.msra.mxu0 %v802
    %836 = vmatpush.bf16.msra.mxu0 %v801
    %837 = vmatpush.bf16.msra.mxu0 %v800
    %838 = vmatpush.bf16.msra.mxu0 %v799
    %839 = vmatmul.bf16.gmra.mxu0 %v671
    %v840 = vpop.f32.mrf.mxu0
    %v841 = vadd.f32 0.0, %v840
    %v842 = vpop.f32.mrf.mxu0
    %v843 = vadd.f32 0.0, %v842
    %844 = vmatmul.bf16.gmra.mxu0 %v673
    %v845 = vpop.f32.mrf.mxu0
    %v846 = vadd.f32 0.0, %v845
    %v847 = vpop.f32.mrf.mxu0
    %v848 = vadd.f32 0.0, %v847
    %849 = vmatmul.bf16.gmra.mxu0 %v675
    %v850 = vpop.f32.mrf.mxu0
    %v851 = vadd.f32 0.0, %v850
    %v852 = vpop.f32.mrf.mxu0
    %v853 = vadd.f32 0.0, %v852
    %854 = vmatmul.bf16.gmra.mxu0 %v677
    %v855 = vpop.f32.mrf.mxu0
    %v856 = vadd.f32 0.0, %v855
    %v857 = vpop.f32.mrf.mxu0
    %v858 = vadd.f32 0.0, %v857
    %859 = vmatmul.bf16.gmra.mxu0 %v679
    %v860 = vpop.f32.mrf.mxu0
    %v861 = vadd.f32 0.0, %v860
    %v862 = vpop.f32.mrf.mxu0
    %v863 = vadd.f32 0.0, %v862
    %864 = vmatmul.bf16.gmra.mxu0 %v681
    %v865 = vpop.f32.mrf.mxu0
    %v866 = vadd.f32 0.0, %v865
    %v867 = vpop.f32.mrf.mxu0
    %v868 = vadd.f32 0.0, %v867
    %869 = vmatmul.bf16.gmra.mxu0 %v683
    %v870 = vpop.f32.mrf.mxu0
    %v871 = vadd.f32 0.0, %v870
    %v872 = vpop.f32.mrf.mxu0
    %v873 = vadd.f32 0.0, %v872
    %874 = vmatmul.bf16.gmra.mxu0 %v685
    %v875 = vpop.f32.mrf.mxu0
    %v876 = vadd.f32 0.0, %v875
    %v877 = vpop.f32.mrf.mxu0
    %v878 = vadd.f32 0.0, %v877
    %879 = vmatmul.bf16.gmra.mxu0 %v687
    %v880 = vpop.f32.mrf.mxu0
    %v881 = vadd.f32 0.0, %v880
    %v882 = vpop.f32.mrf.mxu0
    %v883 = vadd.f32 0.0, %v882
    %884 = vmatmul.bf16.gmra.mxu0 %v689
    %v885 = vpop.f32.mrf.mxu0
    %v886 = vadd.f32 0.0, %v885
    %v887 = vpop.f32.mrf.mxu0
    %v888 = vadd.f32 0.0, %v887
    %889 = vmatmul.bf16.gmra.mxu0 %v691
    %v890 = vpop.f32.mrf.mxu0
    %v891 = vadd.f32 0.0, %v890
    %v892 = vpop.f32.mrf.mxu0
    %v893 = vadd.f32 0.0, %v892
    %894 = vmatmul.bf16.gmra.mxu0 %v693
    %v895 = vpop.f32.mrf.mxu0
    %v896 = vadd.f32 0.0, %v895
    %v897 = vpop.f32.mrf.mxu0
    %v898 = vadd.f32 0.0, %v897
    %899 = vmatmul.bf16.gmra.mxu0 %v695
    %v900 = vpop.f32.mrf.mxu0
    %v901 = vadd.f32 0.0, %v900
    %v902 = vpop.f32.mrf.mxu0
    %v903 = vadd.f32 0.0, %v902
    %904 = vmatmul.bf16.gmra.mxu0 %v697
    %v905 = vpop.f32.mrf.mxu0
    %v906 = vadd.f32 0.0, %v905
    %v907 = vpop.f32.mrf.mxu0
    %v908 = vadd.f32 0.0, %v907
    %909 = vmatmul.bf16.gmra.mxu0 %v699
    %v910 = vpop.f32.mrf.mxu0
    %v911 = vadd.f32 0.0, %v910
    %v912 = vpop.f32.mrf.mxu0
    %v913 = vadd.f32 0.0, %v912
    %914 = vmatmul.bf16.gmra.mxu0 %v701
    %v915 = vpop.f32.mrf.mxu0
    %v916 = vadd.f32 0.0, %v915
    %v917 = vpop.f32.mrf.mxu0
    %v918 = vadd.f32 0.0, %v917
    %919 = vdwg.mxu0
    %920 = vmatpush.bf16.msra.mxu0 %v814
    %921 = vmatpush.bf16.msra.mxu0 %v813
    %922 = vmatpush.bf16.msra.mxu0 %v812
    %923 = vmatpush.bf16.msra.mxu0 %v811
    %924 = vmatpush.bf16.msra.mxu0 %v810
    %925 = vmatpush.bf16.msra.mxu0 %v809
    %926 = vmatpush.bf16.msra.mxu0 %v808
    %927 = vmatpush.bf16.msra.mxu0 %v807
    %928 = vmatmul.bf16.gmra.mxu0 %v672
    %v929 = vpop.f32.mrf.mxu0
    %v930 = vadd.f32 %v841, %v929
    %v931 = vpop.f32.mrf.mxu0
    %v932 = vadd.f32 %v843, %v931
    %933 = vmatmul.bf16.gmra.mxu0 %v674
    %v934 = vpop.f32.mrf.mxu0
    %v935 = vadd.f32 %v846, %v934
    %v936 = vpop.f32.mrf.mxu0
    %v937 = vadd.f32 %v848, %v936
    %938 = vmatmul.bf16.gmra.mxu0 %v676
    %v939 = vpop.f32.mrf.mxu0
    %v940 = vadd.f32 %v851, %v939
    %v941 = vpop.f32.mrf.mxu0
    %v942 = vadd.f32 %v853, %v941
    %943 = vmatmul.bf16.gmra.mxu0 %v678
    %v944 = vpop.f32.mrf.mxu0
    %v945 = vadd.f32 %v856, %v944
    %v946 = vpop.f32.mrf.mxu0
    %v947 = vadd.f32 %v858, %v946
    %948 = vmatmul.bf16.gmra.mxu0 %v680
    %v949 = vpop.f32.mrf.mxu0
    %v950 = vadd.f32 %v861, %v949
    %v951 = vpop.f32.mrf.mxu0
    %v952 = vadd.f32 %v863, %v951
    %953 = vmatmul.bf16.gmra.mxu0 %v682
    %v954 = vpop.f32.mrf.mxu0
    %v955 = vadd.f32 %v866, %v954
    %v956 = vpop.f32.mrf.mxu0
    %v957 = vadd.f32 %v868, %v956
    %958 = vmatmul.bf16.gmra.mxu0 %v684
    %v959 = vpop.f32.mrf.mxu0
    %v960 = vadd.f32 %v871, %v959
    %v961 = vpop.f32.mrf.mxu0
    %v962 = vadd.f32 %v873, %v961
    %963 = vmatmul.bf16.gmra.mxu0 %v686
    %v964 = vpop.f32.mrf.mxu0
    %v965 = vadd.f32 %v876, %v964
    %v966 = vpop.f32.mrf.mxu0
    %v967 = vadd.f32 %v878, %v966
    %968 = vmatmul.bf16.gmra.mxu0 %v688
    %v969 = vpop.f32.mrf.mxu0
    %v970 = vadd.f32 %v881, %v969
    %v971 = vpop.f32.mrf.mxu0
    %v972 = vadd.f32 %v883, %v971
    %973 = vmatmul.bf16.gmra.mxu0 %v690
    %v974 = vpop.f32.mrf.mxu0
    %v975 = vadd.f32 %v886, %v974
    %v976 = vpop.f32.mrf.mxu0
    %v977 = vadd.f32 %v888, %v976
    %978 = vmatmul.bf16.gmra.mxu0 %v692
    %v979 = vpop.f32.mrf.mxu0
    %v980 = vadd.f32 %v891, %v979
    %v981 = vpop.f32.mrf.mxu0
    %v982 = vadd.f32 %v893, %v981
    %983 = vmatmul.bf16.gmra.mxu0 %v694
    %v984 = vpop.f32.mrf.mxu0
    %v985 = vadd.f32 %v896, %v984
    %v986 = vpop.f32.mrf.mxu0
    %v987 = vadd.f32 %v898, %v986
    %988 = vmatmul.bf16.gmra.mxu0 %v696
    %v989 = vpop.f32.mrf.mxu0
    %v990 = vadd.f32 %v901, %v989
    %v991 = vpop.f32.mrf.mxu0
    %v992 = vadd.f32 %v903, %v991
    %993 = vmatmul.bf16.gmra.mxu0 %v698
    %v994 = vpop.f32.mrf.mxu0
    %v995 = vadd.f32 %v906, %v994
    %v996 = vpop.f32.mrf.mxu0
    %v997 = vadd.f32 %v908, %v996
    %998 = vmatmul.bf16.gmra.mxu0 %v700
    %v999 = vpop.f32.mrf.mxu0
    %v1000 = vadd.f32 %v911, %v999
    %v1001 = vpop.f32.mrf.mxu0
    %v1002 = vadd.f32 %v913, %v1001
    %1003 = vmatmul.bf16.gmra.mxu0 %v702
    %v1004 = vpop.f32.mrf.mxu0
    %v1005 = vadd.f32 %v916, %v1004
    %v1006 = vpop.f32.mrf.mxu0
    %v1007 = vadd.f32 %v918, %v1006
    %1008 = vdwg.mxu0
    %v1009 = vpack.c.bf16 %v932, %v930
    %v1010 = vpack.c.bf16 %v937, %v935
    %v1011 = vpack.c.bf16 %v942, %v940
    %v1012 = vpack.c.bf16 %v947, %v945
    %v1013 = vpack.c.bf16 %v952, %v950
    %v1014 = vpack.c.bf16 %v957, %v955
    %v1015 = vpack.c.bf16 %v962, %v960
    %v1016 = vpack.c.bf16 %v967, %v965
    %v1017 = vpack.c.bf16 %v972, %v970
    %v1018 = vpack.c.bf16 %v977, %v975
    %v1019 = vpack.c.bf16 %v982, %v980
    %v1020 = vpack.c.bf16 %v987, %v985
    %v1021 = vpack.c.bf16 %v992, %v990
    %v1022 = vpack.c.bf16 %v997, %v995
    %v1023 = vpack.c.bf16 %v1002, %v1000
    %v1024 = vpack.c.bf16 %v1007, %v1005
    %v1025 = vld [vmem:[#allocation12] sm:$0xf]
    %v1026 = vld [vmem:[#allocation12 + $0x4] sm:$0xf]
    %v1027 = vld [vmem:[#allocation12 + $0x8] sm:$0xf]
    %v1028 = vld [vmem:[#allocation12 + $0xc] sm:$0xf]
    %v1029 = vld [vmem:[#allocation12 + $0x10] sm:$0xf]
    %v1030 = vld [vmem:[#allocation12 + $0x14] sm:$0xf]
    %v1031 = vld [vmem:[#allocation12 + $0x18] sm:$0xf]
    %v1032 = vld [vmem:[#allocation12 + $0x1c] sm:$0xf]
    %v1033 = vld [vmem:[#allocation12 + $0x20] sm:$0xf]
    %v1034 = vld [vmem:[#allocation12 + $0x24] sm:$0xf]
    %v1035 = vld [vmem:[#allocation12 + $0x28] sm:$0xf]
    %v1036 = vld [vmem:[#allocation12 + $0x2c] sm:$0xf]
    %v1037 = vld [vmem:[#allocation12 + $0x30] sm:$0xf]
    %v1038 = vld [vmem:[#allocation12 + $0x34] sm:$0xf]
    %v1039 = vld [vmem:[#allocation12 + $0x38] sm:$0xf]
    %v1040 = vld [vmem:[#allocation12 + $0x3c] sm:$0xf]
    %v1041 = vld [vmem:[%s6] sm:$0x1]
    %v1043 = vperm.slane %v1041, 0
    %v1061 = vunpack.c.l.b16 %v1025
    %v1062 = vunpack.c.l.b16 %v1026
    %v1063 = vunpack.c.l.b16 %v1027
    %v1064 = vunpack.c.l.b16 %v1028
    %v1065 = vunpack.c.l.b16 %v1029
    %v1066 = vunpack.c.l.b16 %v1030
    %v1067 = vunpack.c.l.b16 %v1031
    %v1068 = vunpack.c.l.b16 %v1032
    %v1069 = vunpack.c.l.b16 %v1033
    %v1070 = vunpack.c.l.b16 %v1034
    %v1071 = vunpack.c.l.b16 %v1035
    %v1072 = vunpack.c.l.b16 %v1036
    %v1073 = vunpack.c.l.b16 %v1037
    %v1074 = vunpack.c.l.b16 %v1038
    %v1075 = vunpack.c.l.b16 %v1039
    %v1076 = vunpack.c.l.b16 %v1040
    %v1077 = vpack.c.b16 %v1062, %v1061
    %v1078 = vpack.c.b16 %v1064, %v1063
    %v1079 = vpack.c.b16 %v1066, %v1065
    %v1080 = vpack.c.b16 %v1068, %v1067
    %v1081 = vpack.c.b16 %v1070, %v1069
    %v1082 = vpack.c.b16 %v1072, %v1071
    %v1083 = vpack.c.b16 %v1074, %v1073
    %v1084 = vpack.c.b16 %v1076, %v1075
    %1093 = vmatpush.bf16.msra.mxu0 %v1084
    %1094 = vmatpush.bf16.msra.mxu0 %v1083
    %1095 = vmatpush.bf16.msra.mxu0 %v1082
    %1096 = vmatpush.bf16.msra.mxu0 %v1081
    %1097 = vmatpush.bf16.msra.mxu0 %v1080
    %1098 = vmatpush.bf16.msra.mxu0 %v1079
    %1099 = vmatpush.bf16.msra.mxu0 %v1078
    %1100 = vmatpush.bf16.msra.mxu0 %v1077
    %1101 = vmatmul.bf16.gmra.mxu0 %v1009
    %v1102 = vpop.f32.mrf.mxu0
    %v1103 = vadd.f32 %v1043, %v1102
    %v1104 = vpop.f32.mrf.mxu0
    %v1105 = vadd.f32 %v1043, %v1104
    %1106 = vmatmul.bf16.gmra.mxu0 %v1010
    %v1107 = vpop.f32.mrf.mxu0
    %v1108 = vadd.f32 %v1043, %v1107
    %v1109 = vpop.f32.mrf.mxu0
    %v1110 = vadd.f32 %v1043, %v1109
    %1111 = vmatmul.bf16.gmra.mxu0 %v1011
    %v1112 = vpop.f32.mrf.mxu0
    %v1113 = vadd.f32 %v1043, %v1112
    %v1114 = vpop.f32.mrf.mxu0
    %v1115 = vadd.f32 %v1043, %v1114
    %1116 = vmatmul.bf16.gmra.mxu0 %v1012
    %v1117 = vpop.f32.mrf.mxu0
    %v1118 = vadd.f32 %v1043, %v1117
    %v1119 = vpop.f32.mrf.mxu0
    %v1120 = vadd.f32 %v1043, %v1119
    %1121 = vmatmul.bf16.gmra.mxu0 %v1013
    %v1122 = vpop.f32.mrf.mxu0
    %v1123 = vadd.f32 %v1043, %v1122
    %v1124 = vpop.f32.mrf.mxu0
    %v1125 = vadd.f32 %v1043, %v1124
    %1126 = vmatmul.bf16.gmra.mxu0 %v1014
    %v1127 = vpop.f32.mrf.mxu0
    %v1128 = vadd.f32 %v1043, %v1127
    %v1129 = vpop.f32.mrf.mxu0
    %v1130 = vadd.f32 %v1043, %v1129
    %1131 = vmatmul.bf16.gmra.mxu0 %v1015
    %v1132 = vpop.f32.mrf.mxu0
    %v1133 = vadd.f32 %v1043, %v1132
    %v1134 = vpop.f32.mrf.mxu0
    %v1135 = vadd.f32 %v1043, %v1134
    %1136 = vmatmul.bf16.gmra.mxu0 %v1016
    %v1137 = vpop.f32.mrf.mxu0
    %v1138 = vadd.f32 %v1043, %v1137
    %v1139 = vpop.f32.mrf.mxu0
    %v1140 = vadd.f32 %v1043, %v1139
    %1141 = vmatmul.bf16.gmra.mxu0 %v1017
    %v1142 = vpop.f32.mrf.mxu0
    %v1143 = vadd.f32 %v1043, %v1142
    %v1144 = vpop.f32.mrf.mxu0
    %v1145 = vadd.f32 %v1043, %v1144
    %1146 = vmatmul.bf16.gmra.mxu0 %v1018
    %v1147 = vpop.f32.mrf.mxu0
    %v1148 = vadd.f32 %v1043, %v1147
    %v1149 = vpop.f32.mrf.mxu0
    %v1150 = vadd.f32 %v1043, %v1149
    %1151 = vmatmul.bf16.gmra.mxu0 %v1019
    %v1152 = vpop.f32.mrf.mxu0
    %v1153 = vadd.f32 %v1043, %v1152
    %v1154 = vpop.f32.mrf.mxu0
    %v1155 = vadd.f32 %v1043, %v1154
    %1156 = vmatmul.bf16.gmra.mxu0 %v1020
    %v1157 = vpop.f32.mrf.mxu0
    %v1158 = vadd.f32 %v1043, %v1157
    %v1159 = vpop.f32.mrf.mxu0
    %v1160 = vadd.f32 %v1043, %v1159
    %1161 = vmatmul.bf16.gmra.mxu0 %v1021
    %v1162 = vpop.f32.mrf.mxu0
    %v1163 = vadd.f32 %v1043, %v1162
    %v1164 = vpop.f32.mrf.mxu0
    %v1165 = vadd.f32 %v1043, %v1164
    %1166 = vmatmul.bf16.gmra.mxu0 %v1022
    %v1167 = vpop.f32.mrf.mxu0
    %v1168 = vadd.f32 %v1043, %v1167
    %v1169 = vpop.f32.mrf.mxu0
    %v1170 = vadd.f32 %v1043, %v1169
    %1171 = vmatmul.bf16.gmra.mxu0 %v1023
    %v1172 = vpop.f32.mrf.mxu0
    %v1173 = vadd.f32 %v1043, %v1172
    %v1174 = vpop.f32.mrf.mxu0
    %v1175 = vadd.f32 %v1043, %v1174
    %1176 = vmatmul.bf16.gmra.mxu0 %v1024
    %v1177 = vpop.f32.mrf.mxu0
    %v1178 = vadd.f32 %v1043, %v1177
    %v1179 = vpop.f32.mrf.mxu0
    %v1180 = vadd.f32 %v1043, %v1179
    %1181 = vdwg.mxu0
    %v1182 = vmax.f32 %v1103, 0.0
    %v1183 = vmax.f32 %v1105, 0.0
    %v1184 = vmax.f32 %v1108, 0.0
    %v1185 = vmax.f32 %v1110, 0.0
    %v1186 = vmax.f32 %v1113, 0.0
    %v1187 = vmax.f32 %v1115, 0.0
    %v1188 = vmax.f32 %v1118, 0.0
    %v1189 = vmax.f32 %v1120, 0.0
    %v1190 = vmax.f32 %v1123, 0.0
    %v1191 = vmax.f32 %v1125, 0.0
    %v1192 = vmax.f32 %v1128, 0.0
    %v1193 = vmax.f32 %v1130, 0.0
    %v1194 = vmax.f32 %v1133, 0.0
    %v1195 = vmax.f32 %v1135, 0.0
    %v1196 = vmax.f32 %v1138, 0.0
    %v1197 = vmax.f32 %v1140, 0.0
    %v1198 = vmax.f32 %v1143, 0.0
    %v1199 = vmax.f32 %v1145, 0.0
    %v1200 = vmax.f32 %v1148, 0.0
    %v1201 = vmax.f32 %v1150, 0.0
    %v1202 = vmax.f32 %v1153, 0.0
    %v1203 = vmax.f32 %v1155, 0.0
    %v1204 = vmax.f32 %v1158, 0.0
    %v1205 = vmax.f32 %v1160, 0.0
    %v1206 = vmax.f32 %v1163, 0.0
    %v1207 = vmax.f32 %v1165, 0.0
    %v1208 = vmax.f32 %v1168, 0.0
    %v1209 = vmax.f32 %v1170, 0.0
    %v1210 = vmax.f32 %v1173, 0.0
    %v1211 = vmax.f32 %v1175, 0.0
    %v1212 = vmax.f32 %v1178, 0.0
    %v1213 = vmax.f32 %v1180, 0.0
    %v1214 = vld [vmem:[#allocation3] sm:$0xff]
    %v1215 = vld [vmem:[#allocation9] sm:$0xff]
    %v1216 = vpack.c.bf16 %v1183, %v1182
    %v1217 = vpack.c.bf16 %v1185, %v1184
    %v1218 = vpack.c.bf16 %v1187, %v1186
    %v1219 = vpack.c.bf16 %v1189, %v1188
    %v1220 = vpack.c.bf16 %v1191, %v1190
    %v1221 = vpack.c.bf16 %v1193, %v1192
    %v1222 = vpack.c.bf16 %v1195, %v1194
    %v1223 = vpack.c.bf16 %v1197, %v1196
    %v1224 = vpack.c.bf16 %v1199, %v1198
    %v1225 = vpack.c.bf16 %v1201, %v1200
    %v1226 = vpack.c.bf16 %v1203, %v1202
    %v1227 = vpack.c.bf16 %v1205, %v1204
    %v1228 = vpack.c.bf16 %v1207, %v1206
    %v1229 = vpack.c.bf16 %v1209, %v1208
    %v1230 = vpack.c.bf16 %v1211, %v1210
    %v1231 = vpack.c.bf16 %v1213, %v1212
    %v1233 = vunpack.c.l.b16 %v1215
    %v1234 = vunpack.c.h.b16 %v1215
    %v1235 = vpack.c.b16 %v1233, %v1233
    %v1236 = vpack.c.b16 %v1234, %v1234
    %1239 = vmatpush.bf16.msra.mxu0 %v1223
    %1240 = vmatpush.bf16.msra.mxu0 %v1222
    %1241 = vmatpush.bf16.msra.mxu0 %v1221
    %1242 = vmatpush.bf16.msra.mxu0 %v1220
    %1243 = vmatpush.bf16.msra.mxu0 %v1219
    %1244 = vmatpush.bf16.msra.mxu0 %v1218
    %1245 = vmatpush.bf16.msra.mxu0 %v1217
    %1246 = vmatpush.bf16.msra.mxu0 %v1216
    %1247 = vmatmul.bf16.gmra.mxu0 %v1235
    %v1248 = vpop.f32.mrf.mxu0
    %v1249 = vadd.f32 0.0, %v1248
    %v1250 = vpop.f32.mrf.mxu0
    %1251 = vdwg.mxu0
    %1252 = vmatpush.bf16.msra.mxu0 %v1231
    %1253 = vmatpush.bf16.msra.mxu0 %v1230
    %1254 = vmatpush.bf16.msra.mxu0 %v1229
    %1255 = vmatpush.bf16.msra.mxu0 %v1228
    %1256 = vmatpush.bf16.msra.mxu0 %v1227
    %1257 = vmatpush.bf16.msra.mxu0 %v1226
    %1258 = vmatpush.bf16.msra.mxu0 %v1225
    %1259 = vmatpush.bf16.msra.mxu0 %v1224
    %1260 = vmatmul.bf16.gmra.mxu0 %v1236
    %v1261 = vpop.f32.mrf.mxu0
    %v1262 = vadd.f32 %v1249, %v1261
    %v1263 = vpop.f32.mrf.mxu0
    %1264 = vdwg.mxu0
    %v1265 = vadd.f32 %v1214, %v1262
    %1266 = vst [vmem:[#allocation3] sm:$0xff] %v1265
    // Predicated region
    $region66: #{tpu_custom_call.1} parent=1 // pred_check
      %p1267 = pneg %p125
    $region67: #{tpu_custom_call.1} parent=1 // pred_check_branch
      %1269 = sbr.rel (%p1267) target = $region69
    $region68: #{tpu_custom_call.1} parent=1 // pred_region
      %v1270 = vld [vmem:[#allocation3] sm:$0xff]
      %v1271 = vld [vmem:[#allocation13] sm:$0xff]
      %v1272 = vld [vmem:[#allocation13 + $0x8] sm:$0xff]
      %v1273 = vld [vmem:[#allocation13 + $0x10] sm:$0xff]
      %v1274 = vld [vmem:[#allocation13 + $0x18] sm:$0xff]
      %v1275 = vld [vmem:[#allocation13 + $0x20] sm:$0xff]
      %v1276 = vld [vmem:[#allocation13 + $0x28] sm:$0xff]
      %v1277 = vld [vmem:[#allocation13 + $0x30] sm:$0xff]
      %v1278 = vld [vmem:[#allocation13 + $0x38] sm:$0xff]
      %v1279 = vld [vmem:[#allocation13 + $0x40] sm:$0xff]
      %v1280 = vld [vmem:[#allocation13 + $0x48] sm:$0xff]
      %v1281 = vld [vmem:[#allocation13 + $0x50] sm:$0xff]
      %v1282 = vld [vmem:[#allocation13 + $0x58] sm:$0xff]
      %v1283 = vld [vmem:[#allocation13 + $0x60] sm:$0xff]
      %v1284 = vld [vmem:[#allocation13 + $0x68] sm:$0xff]
      %v1285 = vld [vmem:[#allocation13 + $0x70] sm:$0xff]
      %v1286 = vld [vmem:[#allocation13 + $0x78] sm:$0xff]
      %v1287 = vld [vmem:[%s8] sm:$0x1]
      %v1289 = vperm.slane %v1287, 0
      %1291 = vmatpush.msra.mxu0 %v1286
      %1292 = vmatpush.msra.mxu0 %v1285
      %1293 = vmatpush.msra.mxu0 %v1284
      %1294 = vmatpush.msra.mxu0 %v1283
      %1295 = vmatpush.msra.mxu0 %v1282
      %1296 = vmatpush.msra.mxu0 %v1281
      %1297 = vmatpush.msra.mxu0 %v1280
      %1298 = vmatpush.msra.mxu0 %v1279
      %1299 = vmatpush.msra.mxu0 %v1278
      %1300 = vmatpush.msra.mxu0 %v1277
      %1301 = vmatpush.msra.mxu0 %v1276
      %1302 = vmatpush.msra.mxu0 %v1275
      %1303 = vmatpush.msra.mxu0 %v1274
      %1304 = vmatpush.msra.mxu0 %v1273
      %1305 = vmatpush.msra.mxu0 %v1272
      %1306 = vmatpush.msra.mxu0 %v1271
      %1307 = vmatmul.f32.gmra.mxu0 %v1270
      %v1308 = vpop.f32.mrf.mxu0
      %v1309 = vadd.f32 %v1289, %v1308
      %1310 = vdwg.mxu0
      %1311 = vst [vmem:[#allocation15] sm:$0xff] %v1309
    $region69: #{tpu_custom_call.1} parent=1 // pred_fallthru
      _
    // Predicated region
    $region70: #{tpu_custom_call.1} parent=1 // pred_check
      _
    $region71: #{tpu_custom_call.1} parent=1 // pred_check_branch
      %1313 = sbr.rel (0) target = $region73
    $region72: #{tpu_custom_call.1} parent=1 // pred_region
      %1315 = vsyncadd [#allocation6], 0
      %s1317 = sshll.u32 [#allocation15], 4
      %s1318 = int_to_ptr.vmem [resolvable:$true] %s1317
      %s1319 = sshll.u32 %s9, 4
      %s1320 = int_to_ptr.hbm [resolvable:$true] %s1319
      %1322 = dma.vmem_to_hbm [thread:$0]  %s1318, 128, %s1320, [#allocation6]
    $region73: #{tpu_custom_call.1} parent=1 // pred_fallthru
      _
    // Predicated region
    $region74: #{tpu_custom_call.1} parent=1 // pred_check
      _
    $region75: #{tpu_custom_call.1} parent=1 // pred_check_branch
      %1324 = sbr.rel (0) target = $region77
    $region76: #{tpu_custom_call.1} parent=1 // pred_region
      %1326 = dma.done [#allocation6], 128
    $region77: #{tpu_custom_call.1} parent=1 // pred_fallthru
      _
    %1327 = vsyncpa [#allocation5], 1
    %1328 = vsyncpa [#allocation8], 1
    %1329 = vsyncpa [#allocation11], 1
    %1330 = vsyncpa [#allocation14], 1
    %1331 = vsyncpa [#allocation6], 1

</llo_original>
